<compile_context>
chip_gen: v5e
topology: v5e:2x2
jax: 0.10.0
libtpu: 0.0.40
codegen_flags: <defaults>
</compile_context>

<pallas_src>
import functools

import jax
import jax.numpy as jnp
from jax.experimental import pallas as pl
from jax.experimental.pallas import tpu as pltpu


def _round_up(x, m):
    return (x + m - 1) // m * m


def _default_vmem_limit():
    # 64 MiB scoped budget only where there is clear headroom (v6e: 128 MiB
    # physical); stay at 32 MiB on v5e and on v7x (64 MiB physical VMEM).
    try:
        kind = jax.devices()[0].device_kind.lower()
    except Exception:
        kind = ""
    return (64 if "v6" in kind else 32) * 1024 * 1024


_VMEM_LIMIT = _default_vmem_limit()
_K_SINGLE_MAX = 8192   # largest K handled as a single full-dim block (no K grid)


# ---------------------------------------------------------------------------
# Tile selection
# ---------------------------------------------------------------------------
def _pick_m_tile(M):
    """(padded M, M tile): multiples of 16 (bf16 packs two rows per sublane)."""
    Mp = _round_up(max(M, 1), 16)
    if Mp <= 512:
        return Mp, Mp
    Mp = _round_up(M, 256)
    return Mp, 256


def _pick_n_tile(N):
    """Lane-dense tile (multiple of 128) when possible, else full dim."""
    if N < 128:
        return N
    for c in (512, 256, 128):
        if N % c == 0:
            return c
    return N


def _split_for_cores(Mp, tm, N, tn):
    """Ensure the parallel grid has >= 2 blocks when cheap (v7x has 2 TCs)."""
    if (Mp // tm) * (N // tn) >= 2:
        return tm, tn
    if tn >= 256 and (tn // 2) % 128 == 0:
        return tm, tn // 2            # split N: disjoint weight columns per core
    if tm >= 32 and (tm // 2) % 16 == 0:
        return tm // 2, tn            # split M
    return tm, tn


def _mm_cost(M, K, N, fuse_add, out_dtype):
    bytes_accessed = 2 * (M * K + K * N) + 4 * N + M * N * jnp.dtype(out_dtype).itemsize
    if fuse_add:
        bytes_accessed += 2 * M * N
    return pl.CostEstimate(flops=2 * M * K * N, transcendentals=0,
                           bytes_accessed=int(bytes_accessed))


# ---------------------------------------------------------------------------
# Pallas matmul kernels: C = A @ B + bias (+ identity) with optional fused ReLU
# ---------------------------------------------------------------------------
def _mm_single_kernel(a_ref, b_ref, bias_ref, *rest, relu, fuse_add):
    # Single-shot over K: no accumulator scratch, no init/finalize phases.
    if fuse_add:
        id_ref, o_ref = rest
    else:
        (o_ref,) = rest
    r = jnp.dot(a_ref[...], b_ref[...], preferred_element_type=jnp.float32)
    r = r + bias_ref[...]
    if fuse_add:
        r = r + id_ref[...].astype(jnp.float32)
    if relu:
        r = jnp.maximum(r, 0.0)
    o_ref[...] = r.astype(o_ref.dtype)


def _mm_kgrid_kernel(a_ref, b_ref, bias_ref, *rest, relu, fuse_add):
    # Fallback reduction pipeline for very large K (not used at this model size).
    if fuse_add:
        id_ref, o_ref, acc_ref = rest
    else:
        id_ref = None
        o_ref, acc_ref = rest

    k = pl.program_id(2)

    @pl.when(k == 0)
    def _():
        acc_ref[...] = jnp.zeros_like(acc_ref)

    acc_ref[...] += jnp.dot(a_ref[...], b_ref[...],
                            preferred_element_type=jnp.float32)

    @pl.when(k == pl.num_programs(2) - 1)
    def _():
        r = acc_ref[...] + bias_ref[...]
        if fuse_add:
            r = r + id_ref[...].astype(jnp.float32)
        if relu:
            r = jnp.maximum(r, 0.0)
        o_ref[...] = r.astype(o_ref.dtype)


def _build_mm_single(Mp, K, N, tm, tn, relu, fuse_add, out_dtype):
    in_specs = [
        pl.BlockSpec((tm, K), lambda i, j: (i, 0)),
        pl.BlockSpec((K, tn), lambda i, j: (0, j)),
        pl.BlockSpec((1, tn), lambda i, j: (0, j)),
    ]
    if fuse_add:
        in_specs.append(pl.BlockSpec((tm, tn), lambda i, j: (i, j)))
    return pl.pallas_call(
        functools.partial(_mm_single_kernel, relu=relu, fuse_add=fuse_add),
        out_shape=jax.ShapeDtypeStruct((Mp, N), out_dtype),
        grid_spec=pltpu.PrefetchScalarGridSpec(
            num_scalar_prefetch=0,
            grid=(Mp // tm, N // tn),
            in_specs=in_specs,
            out_specs=pl.BlockSpec((tm, tn), lambda i, j: (i, j)),
        ),
        compiler_params=pltpu.CompilerParams(
            dimension_semantics=("parallel", "parallel"),
            vmem_limit_bytes=_VMEM_LIMIT,
        ),
        cost_estimate=_mm_cost(Mp, K, N, fuse_add, out_dtype),
    )


def _build_mm_kgrid(Mp, Kp, N, tm, tk, tn, relu, fuse_add, out_dtype):
    in_specs = [
        pl.BlockSpec((tm, tk), lambda i, j, k: (i, k)),
        pl.BlockSpec((tk, tn), lambda i, j, k: (k, j)),
        pl.BlockSpec((1, tn), lambda i, j, k: (0, j)),
    ]
    if fuse_add:
        in_specs.append(pl.BlockSpec((tm, tn), lambda i, j, k: (i, j)))
    return pl.pallas_call(
        functools.partial(_mm_kgrid_kernel, relu=relu, fuse_add=fuse_add),
        out_shape=jax.ShapeDtypeStruct((Mp, N), out_dtype),
        grid_spec=pltpu.PrefetchScalarGridSpec(
            num_scalar_prefetch=0,
            grid=(Mp // tm, N // tn, Kp // tk),
            in_specs=in_specs,
            out_specs=pl.BlockSpec((tm, tn), lambda i, j, k: (i, j)),
            scratch_shapes=[pltpu.VMEM((tm, tn), jnp.float32)],
        ),
        compiler_params=pltpu.CompilerParams(
            dimension_semantics=("parallel", "parallel", "arbitrary"),
            vmem_limit_bytes=_VMEM_LIMIT,
        ),
        cost_estimate=_mm_cost(Mp, Kp, N, fuse_add, out_dtype),
    )


def _matmul_impl(a, b, bias, identity, relu, out_dtype):
    """out = a @ b + bias (+ identity), b:(K,N) bf16, bias:(1,N) f32 (pre-made)."""
    M, K = a.shape
    Kb, N = b.shape
    assert K == Kb

    Mp, tm = _pick_m_tile(M)
    a = a.astype(jnp.bfloat16)
    fuse_add = identity is not None
    if fuse_add:
        identity = identity.astype(jnp.bfloat16)
    if Mp != M:
        a = jnp.pad(a, ((0, Mp - M), (0, 0)))
        if fuse_add:
            identity = jnp.pad(identity, ((0, Mp - M), (0, 0)))

    tn = _pick_n_tile(N)
    tm, tn = _split_for_cores(Mp, tm, N, tn)

    if K <= _K_SINGLE_MAX:
        call = _build_mm_single(Mp, K, N, tm, tn, relu, fuse_add, out_dtype)
    else:  # huge-K fallback: pad K and run the reduction pipeline
        tk = 512
        Kp = _round_up(K, tk)
        a = jnp.pad(a, ((0, 0), (0, Kp - K)))
        b = jnp.pad(b, ((0, Kp - K), (0, 0)))
        call = _build_mm_kgrid(Mp, Kp, N, tm, tk, tn, relu, fuse_add, out_dtype)

    args = (a, b, bias) + ((identity,) if fuse_add else ())
    out = call(*args)
    if Mp != M:
        out = out[:M]
    return out


@functools.partial(jax.jit, static_argnames=("relu", "out_dtype"))
def _matmul_plain(a, b, bias, *, relu, out_dtype):
    return _matmul_impl(a, b, bias, None, relu, out_dtype)


@functools.partial(jax.jit, static_argnames=("relu", "out_dtype"))
def _matmul_with_identity(a, b, bias, identity, *, relu, out_dtype):
    return _matmul_impl(a, b, bias, identity, relu, out_dtype)


def pallas_matmul_bias(a, b, bias, relu=False, identity=None,
                       out_dtype=jnp.bfloat16):
    if identity is None:
        return _matmul_plain(a, b, bias, relu=relu, out_dtype=out_dtype)
    return _matmul_with_identity(a, b, bias, identity, relu=relu,
                                 out_dtype=out_dtype)


# ---------------------------------------------------------------------------
# Fused bottleneck tail: conv2(3x3) + BN + ReLU + conv3(1x1) + BN + add + ReLU
# in a single kernel (intermediate never touches HBM).
# ---------------------------------------------------------------------------
def _tail_kernel(a_ref, w2_ref, b2_ref, w3_ref, b3_ref, id_ref, o_ref):
    t = jnp.dot(a_ref[...], w2_ref[...], preferred_element_type=jnp.float32)
    t = jnp.maximum(t + b2_ref[...], 0.0).astype(jnp.bfloat16)
    r = jnp.dot(t, w3_ref[...], preferred_element_type=jnp.float32)
    r = r + b3_ref[...] + id_ref[...].astype(jnp.float32)
    o_ref[...] = jnp.maximum(r, 0.0).astype(o_ref.dtype)


def _build_tail(Mp, K2, W, N3, tm, out_dtype):
    in_specs = [
        pl.BlockSpec((tm, K2), lambda i: (i, 0)),    # im2col patches of conv1 out
        pl.BlockSpec((K2, W), lambda i: (0, 0)),     # conv2 weight
        pl.BlockSpec((1, W), lambda i: (0, 0)),      # conv2 bias
        pl.BlockSpec((W, N3), lambda i: (0, 0)),     # conv3 weight
        pl.BlockSpec((1, N3), lambda i: (0, 0)),     # conv3 bias
        pl.BlockSpec((tm, N3), lambda i: (i, 0)),    # residual identity
    ]
    flops = 2 * Mp * K2 * W + 2 * Mp * W * N3
    bytes_accessed = (2 * (Mp * K2 + K2 * W + W * N3 + Mp * N3)
                      + 4 * (W + N3)
                      + Mp * N3 * jnp.dtype(out_dtype).itemsize)
    return pl.pallas_call(
        _tail_kernel,
        out_shape=jax.ShapeDtypeStruct((Mp, N3), out_dtype),
        grid_spec=pltpu.PrefetchScalarGridSpec(
            num_scalar_prefetch=0,
            grid=(Mp // tm,),
            in_specs=in_specs,
            out_specs=pl.BlockSpec((tm, N3), lambda i: (i, 0)),
        ),
        compiler_params=pltpu.CompilerParams(
            dimension_semantics=("parallel",),
            vmem_limit_bytes=_VMEM_LIMIT,
        ),
        cost_estimate=pl.CostEstimate(flops=flops, transcendentals=0,
                                      bytes_accessed=int(bytes_accessed)),
    )


@jax.jit
def _fused_tail_call(a2, w2, b2, w3, b3, id2d):
    M, K2 = a2.shape
    W = w2.shape[1]
    N3 = w3.shape[1]
    Mp, tm = _pick_m_tile(M)
    a2 = a2.astype(jnp.bfloat16)
    id2d = id2d.astype(jnp.bfloat16)
    if Mp != M:
        a2 = jnp.pad(a2, ((0, Mp - M), (0, 0)))
        id2d = jnp.pad(id2d, ((0, Mp - M), (0, 0)))
    if Mp // tm == 1 and tm >= 32 and (tm // 2) % 16 == 0:
        tm = tm // 2   # give both v7x cores a row block when possible
    out = _build_tail(Mp, K2, W, N3, tm, jnp.bfloat16)(a2, w2, b2, w3, b3, id2d)
    if Mp != M:
        out = out[:M]
    return out


# ---------------------------------------------------------------------------
# Conv / pool glue (patch extraction & window-pool stay in plain JAX)
# ---------------------------------------------------------------------------
def _im2col(x, kh, kw, stride, pad):
    # x: (B, H, W, C) bf16 -> ((B*Ho*Wo), kh*kw*C)
    x = jnp.pad(x, ((0, 0), (pad, pad), (pad, pad), (0, 0)))
    B, Hp, Wp, C = x.shape
    Ho = (Hp - kh) // stride + 1
    Wo = (Wp - kw) // stride + 1
    cols = []
    for i in range(kh):
        for j in range(kw):
            cols.append(x[:, i:i + stride * (Ho - 1) + 1:stride,
                          j:j + stride * (Wo - 1) + 1:stride, :])
    cols = jnp.stack(cols, axis=3)  # (B, Ho, Wo, kh*kw, C)
    return cols.reshape(B * Ho * Wo, kh * kw * C), Ho, Wo


def conv_bn(x, w2d, bias, ksize, stride, pad, relu, identity=None,
            out_dtype=jnp.bfloat16):
    """Conv2d (no bias) + folded inference BatchNorm bias (+ fused residual)."""
    B = x.shape[0]
    N = w2d.shape[1]
    if ksize == 1:
        # 1x1 conv: no im2col, just a (strided) reshape.
        if stride > 1:
            x = x[:, ::stride, ::stride, :]
        _, Ho, Wo, C = x.shape
        a = x.reshape(B * Ho * Wo, C)
    else:
        # TODO(synk): kxk convs still materialize the kh*kw-duplicated im2col
        # matrix in HBM (bf16); generating patch tiles inside the kernel needs
        # element-offset BlockSpecs / manual per-tap DMAs.
        a, Ho, Wo = _im2col(x, ksize, ksize, stride, pad)
    id2d = identity.reshape(B * Ho * Wo, N) if identity is not None else None
    out = pallas_matmul_bias(a, w2d, bias, relu=relu, identity=id2d,
                             out_dtype=out_dtype)
    return out.reshape(B, Ho, Wo, N)


def bottleneck_tail(x, w2, b2, w3, b3, stride, identity):
    """conv2 3x3 (+ReLU) then conv3 1x1 + residual + ReLU, fused in one kernel."""
    B = x.shape[0]
    cols, Ho, Wo = _im2col(x, 3, 3, stride, 1)
    M2, K2 = cols.shape
    W = w2.shape[1]
    N3 = w3.shape[1]
    id2d = identity.reshape(M2, N3)

    Mp, tm = _pick_m_tile(M2)
    # Conservative VMEM estimate (2x-buffered bf16 inputs + output).
    est = 4 * (tm * K2 + K2 * W + W * N3 + tm * N3 + W + N3) + 4 * tm * N3
    if K2 <= _K_SINGLE_MAX and est <= int(0.7 * _VMEM_LIMIT):
        out = _fused_tail_call(cols, w2, b2, w3, b3, id2d)
    else:  # fallback: two separate matmul kernels (residual fused into conv3)
        t = pallas_matmul_bias(cols, w2, b2, relu=True)
        out = pallas_matmul_bias(t, w3, b3, relu=True, identity=id2d)
    return out.reshape(B, Ho, Wo, N3)


def maxpool_3x3_s2(x):
    # TODO(synk): 3x3/s2 max-pool kept as plain-JAX window reduction (glue, not hot path).
    init = jnp.array(-jnp.inf, dtype=x.dtype)
    return jax.lax.reduce_window(x, init, jax.lax.max,
                                 (1, 3, 3, 1), (1, 2, 2, 1),
                                 ((0, 0), (1, 1), (1, 1), (0, 0)))


# ---------------------------------------------------------------------------
# Synthetic deterministic ResNet-50 parameters + forward
# ---------------------------------------------------------------------------
RESNET50_STAGES = [(3, 64), (4, 128), (6, 256), (3, 512)]  # (num_blocks, width)


def init_params(seed, embed_size):
    base = jax.random.PRNGKey(seed)
    counter = [0]

    def nxt():
        counter[0] += 1
        return jax.random.fold_in(base, counter[0])

    def conv_p(kh, kw, cin, cout):
        # BN (inference) folded: scale absorbed into the synthetic weights,
        # shift into the bias.  Stored matmul-ready: (K, N) bf16 / (1, N) f32.
        fan_in = kh * kw * cin
        w = jax.random.normal(nxt(), (kh, kw, cin, cout), jnp.float32) / jnp.sqrt(float(fan_in))
        b = jax.random.normal(nxt(), (cout,), jnp.float32) * 0.01
        return w.reshape(kh * kw * cin, cout).astype(jnp.bfloat16), b.reshape(1, cout)

    params = {}
    params["stem_w"], params["stem_b"] = conv_p(7, 7, 3, 64)

    stages = []
    cin = 64
    for _, (nblocks, width) in enumerate(RESNET50_STAGES):
        cout = width * 4
        blocks = []
        for b in range(nblocks):
            blk = {}
            blk["w1"], blk["b1"] = conv_p(1, 1, cin, width)
            blk["w2"], blk["b2"] = conv_p(3, 3, width, width)
            blk["w3"], blk["b3"] = conv_p(1, 1, width, cout)
            if b == 0:  # projection shortcut (channel change and/or stride)
                blk["wd"], blk["bd"] = conv_p(1, 1, cin, cout)
            blocks.append(blk)
            cin = cout
        stages.append(blocks)
    params["stages"] = stages

    ew = jax.random.normal(nxt(), (2048, embed_size), jnp.float32) / jnp.sqrt(2048.0)
    params["embed_w"] = ew.astype(jnp.bfloat16)
    params["embed_b"] = (jax.random.normal(nxt(), (embed_size,), jnp.float32) * 0.01
                         ).reshape(1, embed_size)
    return params


def encoder_cnn_forward(params, images_nchw):
    """images_nchw: (B, 3, H, W) float32, like the PyTorch module input."""
    x = jnp.transpose(images_nchw, (0, 2, 3, 1)).astype(jnp.bfloat16)  # NHWC bf16

    # stem: conv7x7/s2 + BN + ReLU, then maxpool3x3/s2
    x = conv_bn(x, params["stem_w"], params["stem_b"], 7, 2, 3, relu=True)
    x = maxpool_3x3_s2(x)

    # 4 stages of bottleneck blocks; batch folded into the matmul M axis.
    for s, blocks in enumerate(params["stages"]):
        for b, blk in enumerate(blocks):
            stride = 2 if (s > 0 and b == 0) else 1   # torchvision v1.5: stride on 3x3
            identity = x
            if "wd" in blk:
                identity = conv_bn(x, blk["wd"], blk["bd"], 1, stride, 0,
                                   relu=False)
            out1 = conv_bn(x, blk["w1"], blk["b1"], 1, 1, 0, relu=True)
            # conv2 + conv3 + residual + ReLU fused in one Pallas kernel.
            x = bottleneck_tail(out1, blk["w2"], blk["b2"], blk["w3"], blk["b3"],
                                stride, identity)

    # adaptive avg-pool to 1x1 + flatten -> (B, 2048), in f32 for accuracy
    feats = jnp.mean(x.astype(jnp.float32), axis=(1, 2))
    # embed Linear(2048, embed_size)
    return pallas_matmul_bias(feats, params["embed_w"], params["embed_b"],
                              relu=False, out_dtype=jnp.float32)


if __name__ == "__main__":
    embed_size = 32
    key = jax.random.PRNGKey(0)
    # Small NCHW input consistent with the module (3-channel images).
    images = jax.random.normal(key, (2, 3, 32, 32), jnp.float32)

    params = init_params(0, embed_size)
    fwd = jax.jit(encoder_cnn_forward)
    feats = jax.block_until_ready(fwd(params, images))

    assert feats.shape == (2, embed_size), feats.shape
    assert bool(jnp.all(jnp.isfinite(feats)))
    print("KERNEL_OK")
</pallas_src>

<mosaic_0001>
module attributes {stable_mosaic.version = 11 : i64} {
  func.func @_mm_single_kernel(%arg0: i32, %arg1: i32, %arg2: memref<256x147xbf16, #tpu.memory_space<vmem>>, %arg3: memref<147x64xbf16, #tpu.memory_space<vmem>>, %arg4: memref<1x64xf32, #tpu.memory_space<vmem>>, %arg5: memref<256x64xbf16, #tpu.memory_space<vmem>>) attributes {dimension_semantics = [#tpu.dimension_semantics<parallel>, #tpu.dimension_semantics<parallel>], iteration_bounds = array<i64: 2, 1>, scalar_prefetch = 0 : i64, scratch_operands = 0 : i64, tpu.core_type = #tpu.core_type<tc>, window_params = [{transform_indices = @transform_0, window_bounds = array<i64: 256, 147>}, {transform_indices = @transform_1, window_bounds = array<i64: 147, 64>}, {transform_indices = @transform_2, window_bounds = array<i64: 1, 64>}, {transform_indices = @transform_3, window_bounds = array<i64: 256, 64>}]} {
    %c0 = arith.constant 0 : index
    %c0_0 = arith.constant 0 : index
    %0 = vector.load %arg2[%c0, %c0_0] : memref<256x147xbf16, #tpu.memory_space<vmem>>, vector<256x147xbf16>
    %c0_1 = arith.constant 0 : index
    %c0_2 = arith.constant 0 : index
    %1 = vector.load %arg3[%c0_1, %c0_2] : memref<147x64xbf16, #tpu.memory_space<vmem>>, vector<147x64xbf16>
    %cst = arith.constant dense<0.000000e+00> : vector<256x64xf32>
    %2 = tpu.matmul %0, %1, %cst {dimension_numbers = #tpu.dot_dimension_numbers<[1], [0], [0], [1], [0, 0, 1, 1], [], []>} : vector<256x147xbf16>, vector<147x64xbf16>, vector<256x64xf32> -> vector<256x64xf32>
    %c0_3 = arith.constant 0 : index
    %c0_4 = arith.constant 0 : index
    %3 = vector.load %arg4[%c0_3, %c0_4] : memref<1x64xf32, #tpu.memory_space<vmem>>, vector<1x64xf32>
    %4 = vector.broadcast %3 : vector<1x64xf32> to vector<256x64xf32>
    %5 = arith.addf %2, %4 : vector<256x64xf32>
    %cst_5 = arith.constant 0.000000e+00 : f32
    %6 = vector.broadcast %cst_5 : f32 to vector<256x64xf32>
    %7 = arith.maximumf %5, %6 : vector<256x64xf32>
    %8 = arith.truncf %7 : vector<256x64xf32> to vector<256x64xbf16>
    %c0_6 = arith.constant 0 : index
    %c0_7 = arith.constant 0 : index
    %9 = vector.load %arg5[%c0_6, %c0_7] : memref<256x64xbf16, #tpu.memory_space<vmem>>, vector<256x64xbf16>
    tpu.vector_store %arg5[%c0_6, %c0_7], %8 {strides = array<i32>} : memref<256x64xbf16, #tpu.memory_space<vmem>>, vector<256x64xbf16>,
    return
  }
  func.func @transform_0(%arg0: i32, %arg1: i32) -> (i32, i32) {
    %c0_i32 = arith.constant 0 : i32
    %c0_i32_0 = arith.constant 0 : i32
    return %arg0, %c0_i32 : i32, i32
  }
  func.func @transform_1(%arg0: i32, %arg1: i32) -> (i32, i32) {
    %c0_i32 = arith.constant 0 : i32
    %c0_i32_0 = arith.constant 0 : i32
    return %c0_i32, %arg1 : i32, i32
  }
  func.func @transform_2(%arg0: i32, %arg1: i32) -> (i32, i32) {
    %c0_i32 = arith.constant 0 : i32
    %c0_i32_0 = arith.constant 0 : i32
    return %c0_i32, %arg1 : i32, i32
  }
  func.func @transform_3(%arg0: i32, %arg1: i32) -> (i32, i32) {
    %c0_i32 = arith.constant 0 : i32
    return %arg0, %arg1 : i32, i32
  }
}

</mosaic_0001>

<llo_original>
// kernel: _matmul_plain.1
$region0: #{_matmul_plain.1}
  #allocation0 [shape = 'u32[]', space=smem, size = 0x4, offset = 0x4, fixed_abs, tag = 'smem constant byte address 0x4 - core index']
  #allocation1 [shape = 'u32[72,128]{1,0:T(1,128)}', space=vmem, size = 0x9000, scoped, tag = 'internal scratch']
  %s0 = inlined_call_operand.vmem [shape: bf16[512,147], index: 0, kind: input, shape index: {}]
  %s1 = inlined_call_operand.vmem [shape: bf16[147,64], index: 1, kind: input, shape index: {}]
  %s2 = inlined_call_operand.vmem [shape: f32[1,64], index: 2, kind: input, shape index: {}]
  %s3 = inlined_call_operand.vmem [shape: bf16[512,64], index: 3, kind: output, shape index: {}]
  %s4 = sld [smem:[#allocation0]]
  $region45: #{_matmul_plain.1} parent=0
    _
  %s6 = ssub.s32 1, %s4
  %s7 = scalar_select 0, %s6, %s4
  loop: start=0, step=1, limit=4
  $region2: #{_matmul_plain.1} parent=0 // loop_pre_header
    _
  $region3: #{_matmul_plain.1} parent=0 // loop_header
    %s9 = sphi 0, %s13
    %p10 = scmp.ge.s32.totalorder %s9, 4
    %s16 = sphi 0, %s28
    %s17 = sphi 0, %s24
    %s18 = sphi 0, %s16
    %s19 = sphi 0, %s17
    %s20 = sphi 0, %s18
    %s21 = sphi 0, %s19
    %s31 = sphi 0, %s33
    %s34 = sphi 0, %s31
    %s35 = sphi 0, %s34
    %s51 = sphi 0, %s35
    %s57 = sphi 0, %s59
    %s60 = sphi 0, %s57
    %s61 = sphi 0, %s60
    %s77 = sphi 0, %s61
    %s83 = sphi 0, %s85
    %s86 = sphi 0, %s83
    %s87 = sphi 0, %s86
    %s103 = sphi 0, %s87
    %s111 = sphi 0, %s113
    %s114 = sphi 0, %s111
    %s115 = sphi 0, %s114
    %s131 = sphi 0, %s115
  $region4: #{_matmul_plain.1} parent=0 // loop_header_branch
    %12 = sbr.rel (%p10) target = $region8
  $region5: #{_matmul_plain.1} parent=0 // loop_body
    %s14 = ssub.s32 %s9, 1
    %s15 = ssub.s32 %s9, 2
    %s22 = sadd.s32 1, %s17
    %p23 = scmp.ge.s32.totalorder %s22, 1
    %s24 = scalar_select %p23, 0, %s22
    %s25 = sadd.s32 1, %s16
    %s26 = scalar_select %p23, %s25, %s16
    %p27 = scmp.ge.s32.totalorder %s26, 2
    %s28 = scalar_select %p27, 0, %s26
    %s29 = ssub.s32 %s16, %s28
    %p30 = scmp.eq.s32.totalorder %s29, 0
    %s32 = sadd.s32 %s31, 1
    %s33 = scalar_select %p30, %s31, %s32
    %p36 = pneg %p30
    %p37 = scmp.eq.s32.totalorder %s9, 1
    %p38 = por %p36, %p37
    %p39 = scmp.ne.s32.totalorder %s31, %s34
    %p40 = scmp.eq.s32.totalorder %s9, 0
    %p41 = por %p39, %p40
    %p42 = scmp.ne.s32.totalorder %s31, %s34
    %p43 = scmp.eq.s32.totalorder %s14, 1
    %p44 = por %p42, %p43
    %p45 = scmp.ne.s32.totalorder %s34, %s35
    %p46 = scmp.eq.s32.totalorder %s14, 0
    %p47 = por %p45, %p46
    %p48 = scmp.ne.s32.totalorder %s34, %s35
    %p49 = scmp.eq.s32.totalorder %s15, 1
    %p50 = por %p48, %p49
    %p52 = scmp.ne.s32.totalorder %s35, %s51
    %p53 = scmp.eq.s32.totalorder %s15, 0
    %p54 = por %p52, %p53
    %s55 = ssub.s32 %s17, %s24
    %p56 = scmp.eq.s32.totalorder %s55, 0
    %s58 = sadd.s32 %s57, 1
    %s59 = scalar_select %p56, %s57, %s58
    %p62 = pneg %p56
    %p63 = scmp.eq.s32.totalorder %s9, 1
    %p64 = por %p62, %p63
    %p65 = scmp.ne.s32.totalorder %s57, %s60
    %p66 = scmp.eq.s32.totalorder %s9, 0
    %p67 = por %p65, %p66
    %p68 = scmp.ne.s32.totalorder %s57, %s60
    %p69 = scmp.eq.s32.totalorder %s14, 1
    %p70 = por %p68, %p69
    %p71 = scmp.ne.s32.totalorder %s60, %s61
    %p72 = scmp.eq.s32.totalorder %s14, 0
    %p73 = por %p71, %p72
    %p74 = scmp.ne.s32.totalorder %s60, %s61
    %p75 = scmp.eq.s32.totalorder %s15, 1
    %p76 = por %p74, %p75
    %p78 = scmp.ne.s32.totalorder %s61, %s77
    %p79 = scmp.eq.s32.totalorder %s15, 0
    %p80 = por %p78, %p79
    %s81 = ssub.s32 %s17, %s24
    %p82 = scmp.eq.s32.totalorder %s81, 0
    %s84 = sadd.s32 %s83, 1
    %s85 = scalar_select %p82, %s83, %s84
    %p88 = pneg %p82
    %p89 = scmp.eq.s32.totalorder %s9, 1
    %p90 = por %p88, %p89
    %p91 = scmp.ne.s32.totalorder %s83, %s86
    %p92 = scmp.eq.s32.totalorder %s9, 0
    %p93 = por %p91, %p92
    %p94 = scmp.ne.s32.totalorder %s83, %s86
    %p95 = scmp.eq.s32.totalorder %s14, 1
    %p96 = por %p94, %p95
    %p97 = scmp.ne.s32.totalorder %s86, %s87
    %p98 = scmp.eq.s32.totalorder %s14, 0
    %p99 = por %p97, %p98
    %p100 = scmp.ne.s32.totalorder %s86, %s87
    %p101 = scmp.eq.s32.totalorder %s15, 1
    %p102 = por %p100, %p101
    %p104 = scmp.ne.s32.totalorder %s87, %s103
    %p105 = scmp.eq.s32.totalorder %s15, 0
    %p106 = por %p104, %p105
    %s107 = ssub.s32 %s16, %s28
    %s108 = ssub.s32 %s17, %s24
    %s109 = sor.u32 %s107, %s108
    %p110 = scmp.eq.s32.totalorder %s109, 0
    %s112 = sadd.s32 %s111, 1
    %s113 = scalar_select %p110, %s111, %s112
    %p116 = pneg %p110
    %p117 = scmp.eq.s32.totalorder %s9, 1
    %p118 = por %p116, %p117
    %p119 = scmp.ne.s32.totalorder %s111, %s114
    %p120 = scmp.eq.s32.totalorder %s9, 0
    %p121 = por %p119, %p120
    %p122 = scmp.ne.s32.totalorder %s111, %s114
    %p123 = scmp.eq.s32.totalorder %s14, 1
    %p124 = por %p122, %p123
    %p125 = scmp.ne.s32.totalorder %s114, %s115
    %p126 = scmp.eq.s32.totalorder %s14, 0
    %p127 = por %p125, %p126
    %p128 = scmp.ne.s32.totalorder %s114, %s115
    %p129 = scmp.eq.s32.totalorder %s15, 1
    %p130 = por %p128, %p129
    %p132 = scmp.ne.s32.totalorder %s115, %s131
    %p133 = scmp.eq.s32.totalorder %s15, 0
    %p134 = por %p132, %p133
    %p135 = scmp.le.s32.totalorder 1, %s9
    %p136 = scmp.lt.s32.totalorder %s9, 3
    %p137 = pnand %p135, %p136
    %p138 = pneg %p137
    // Predicated region
    $region9: #{_matmul_plain.1} parent=5 // pred_check
      _
    $region10: #{_matmul_plain.1} parent=5 // pred_check_branch
      %140 = sbr.rel (%p137) target = $region12
    $region11: #{_matmul_plain.1} parent=5 // pred_region
      %s141 = ssub.s32 %s9, 1
      // Predicated region
      $region13: #{_matmul_plain.1} parent=11 // pred_check
        %p142 = pneg %p73
      $region14: #{_matmul_plain.1} parent=11 // pred_check_branch
        %144 = sbr.rel (%p142) target = $region16
      $region15: #{_matmul_plain.1} parent=11 // pred_region
        %p145 = scmp.lt.s32.totalorder %s19, 0
        %s146 = scalar_select %p145, %s19, 0
        %s147 = smul.addr %s146, 4
        %s148 = scalar_lea.vmem %s1, %s147
      $region16: #{_matmul_plain.1} parent=11 // pred_fallthru
        _
      // Predicated region
      $region17: #{_matmul_plain.1} parent=11 // pred_check
        %p149 = pneg %p99
      $region18: #{_matmul_plain.1} parent=11 // pred_check_branch
        %151 = sbr.rel (%p149) target = $region20
      $region19: #{_matmul_plain.1} parent=11 // pred_region
        %p152 = scmp.lt.s32.totalorder %s19, 0
        %s153 = scalar_select %p152, %s19, 0
        %s154 = scalar_lea.vmem %s2, %s153
      $region20: #{_matmul_plain.1} parent=11 // pred_fallthru
        _
    $region12: #{_matmul_plain.1} parent=5 // pred_fallthru
      _
    %p155 = scmp.lt.s32.totalorder %s9, 2
    // Predicated region
    $region21: #{_matmul_plain.1} parent=5 // pred_check
      %p156 = pneg %p155
    $region22: #{_matmul_plain.1} parent=5 // pred_check_branch
      %158 = sbr.rel (%p156) target = $region24
    $region23: #{_matmul_plain.1} parent=5 // pred_region
      // Predicated region
      $region25: #{_matmul_plain.1} parent=23 // pred_check
        %p159 = pneg %p41
      $region26: #{_matmul_plain.1} parent=23 // pred_check_branch
        %161 = sbr.rel (%p159) target = $region28
      $region27: #{_matmul_plain.1} parent=23 // pred_region
        %s162 = smul.u32 32, %s16
        %p163 = scmp.lt.s32.totalorder %s162, 63
        %s164 = scalar_select %p163, %s162, 63
        %s165 = smul.addr %s164, 2
        %s166 = smul.addr %s165, 4
        %s167 = scalar_lea.vmem %s0, %s166
        %s168 = smul.u32 32, %s16
      $region28: #{_matmul_plain.1} parent=23 // pred_fallthru
        _
    $region24: #{_matmul_plain.1} parent=5 // pred_fallthru
      _
    %p169 = scmp.le.s32.totalorder 1, %s9
    %p170 = scmp.lt.s32.totalorder %s9, 3
    %p171 = pnand %p169, %p170
    %p172 = pneg %p171
    // Predicated region
    $region29: #{_matmul_plain.1} parent=5 // pred_check
      _
    $region30: #{_matmul_plain.1} parent=5 // pred_check_branch
      %174 = sbr.rel (%p171) target = $region32
    $region31: #{_matmul_plain.1} parent=5 // pred_region
      %s175 = ssub.s32 %s9, 1
      %s176 = smul.u32 32, %s18
      %p177 = scmp.lt.s32.totalorder %s176, 63
      %s178 = scalar_select %p177, %s176, 63
      %s179 = smul.addr %s178, 2
      %s180 = smul.addr %s179, 4
      %s181 = scalar_lea.vmem %s0, %s180
      %p182 = pneg %p47
      %p183 = pneg %p44
      %p184 = scmp.lt.s32.totalorder %s19, 0
      %s185 = scalar_select %p184, %s19, 0
      %s186 = smul.addr %s185, 4
      %s187 = scalar_lea.vmem %s1, %s186
      %p188 = pneg %p73
      %p189 = pneg %p70
      %p190 = scmp.lt.s32.totalorder %s19, 0
      %s191 = scalar_select %p190, %s19, 0
      %s192 = scalar_lea.vmem %s2, %s191
      %p193 = pneg %p99
      %p194 = pneg %p96
      %p195 = pneg %p127
      %p196 = pneg %p124
      %s197 = smul.u32 32, %s18
      %p198 = scmp.lt.s32.totalorder %s197, 63
      %s199 = scalar_select %p198, %s197, 63
      %p200 = scmp.lt.s32.totalorder %s19, 0
      %s201 = scalar_select %p200, %s19, 0
      %s202 = sadd.s32 %s201, %s199
      %s203 = smul.addr %s202, 4
      %s204 = scalar_lea.vmem %s3, %s203
      %s205 = smul.u32 32, %s18
      %p206 = scmp.lt.s32.totalorder %s205, 63
      %s207 = scalar_select %p206, %s205, 63
      %s208 = smul.addr %s207, 2
      %s209 = smul.addr %s208, 4
      %s210 = scalar_lea.vmem %s0, %s209
      %s211 = smul.u32 32, %s18
      %p212 = scmp.lt.s32.totalorder %s19, 0
      %s213 = scalar_select %p212, %s19, 0
      %s214 = smul.addr %s213, 4
      %s215 = scalar_lea.vmem %s1, %s214
      %p216 = scmp.lt.s32.totalorder %s19, 0
      %s217 = scalar_select %p216, %s19, 0
      %s218 = scalar_lea.vmem %s2, %s217
      %s219 = smul.u32 32, %s18
      %p220 = scmp.lt.s32.totalorder %s219, 63
      %s221 = scalar_select %p220, %s219, 63
      %p222 = scmp.lt.s32.totalorder %s19, 0
      %s223 = scalar_select %p222, %s19, 0
      %s224 = sadd.s32 %s223, %s221
      %s225 = smul.addr %s224, 4
      %s226 = scalar_lea.vmem %s3, %s225
      %s227 = smul.u32 32, %s18
      %v229 = vld [vmem:[%s210] sm:$0xff]
      %v230 = vld [vmem:[%s210 + $0x8] sm:$0xff]
      %v231 = vld [vmem:[%s210 + $0x10] sm:$0xff]
      %v232 = vld [vmem:[%s210 + $0x18] sm:$0xff]
      %v233 = vld [vmem:[%s210 + $0x20] sm:$0xff]
      %v234 = vld [vmem:[%s210 + $0x28] sm:$0xff]
      %v235 = vld [vmem:[%s210 + $0x30] sm:$0xff]
      %v236 = vld [vmem:[%s210 + $0x38] sm:$0xff]
      %v237 = vld [vmem:[%s210 + $0x40] sm:$0xff]
      %v238 = vld [vmem:[%s210 + $0x48] sm:$0xff]
      %v239 = vld [vmem:[%s210 + $0x50] sm:$0xff]
      %v240 = vld [vmem:[%s210 + $0x58] sm:$0xff]
      %v241 = vld [vmem:[%s210 + $0x60] sm:$0xff]
      %v242 = vld [vmem:[%s210 + $0x68] sm:$0xff]
      %v243 = vld [vmem:[%s210 + $0x70] sm:$0xff]
      %v244 = vld [vmem:[%s210 + $0x78] sm:$0xff]
      %v245 = vld [vmem:[%s210 + $0x80] sm:$0xff]
      %v246 = vld [vmem:[%s210 + $0x88] sm:$0xff]
      %v247 = vld [vmem:[%s210 + $0x90] sm:$0xff]
      %v248 = vld [vmem:[%s210 + $0x98] sm:$0xff]
      %v249 = vld [vmem:[%s210 + $0xa0] sm:$0xff]
      %v250 = vld [vmem:[%s210 + $0xa8] sm:$0xff]
      %v251 = vld [vmem:[%s210 + $0xb0] sm:$0xff]
      %v252 = vld [vmem:[%s210 + $0xb8] sm:$0xff]
      %v253 = vld [vmem:[%s210 + $0xc0] sm:$0xff]
      %v254 = vld [vmem:[%s210 + $0xc8] sm:$0xff]
      %v255 = vld [vmem:[%s210 + $0xd0] sm:$0xff]
      %v256 = vld [vmem:[%s210 + $0xd8] sm:$0xff]
      %v257 = vld [vmem:[%s210 + $0xe0] sm:$0xff]
      %v258 = vld [vmem:[%s210 + $0xe8] sm:$0xff]
      %v259 = vld [vmem:[%s210 + $0xf0] sm:$0xff]
      %v260 = vld [vmem:[%s210 + $0xf8] sm:$0xff]
      %v261 = vld [vmem:[%s215] sm:$0xf]
      %v262 = vld [vmem:[%s215 + $0x4] sm:$0xf]
      %v263 = vld [vmem:[%s215 + $0x8] sm:$0xf]
      %v264 = vld [vmem:[%s215 + $0xc] sm:$0xf]
      %v265 = vld [vmem:[%s215 + $0x10] sm:$0xf]
      %v266 = vld [vmem:[%s215 + $0x14] sm:$0xf]
      %v267 = vld [vmem:[%s215 + $0x18] sm:$0xf]
      %v268 = vld [vmem:[%s215 + $0x1c] sm:$0xf]
      %v269 = vld [vmem:[%s215 + $0x20] sm:$0xf]
      %v270 = vld [vmem:[%s215 + $0x24] sm:$0xf]
      %v271 = vld [vmem:[%s215 + $0x28] sm:$0xf]
      %v272 = vld [vmem:[%s215 + $0x2c] sm:$0xf]
      %v273 = vld [vmem:[%s215 + $0x30] sm:$0xf]
      %v274 = vld [vmem:[%s215 + $0x34] sm:$0xf]
      %v275 = vld [vmem:[%s215 + $0x38] sm:$0xf]
      %v276 = vld [vmem:[%s215 + $0x3c] sm:$0xf]
      %v277 = vld [vmem:[%s215 + $0x40] sm:$0xf]
      %v278 = vld [vmem:[%s215 + $0x44] sm:$0xf]
      %v279 = vld [vmem:[%s215 + $0x48] sm:$0x3]
      %v280 = vld [vmem:[%s218] sm:$0x1]
      %v282 = vperm.slane %v280, 0
      %v316 = vunpack.c.l.b16 %v229
      %v317 = vunpack.c.h.b16 %v229
      %v318 = vunpack.c.l.b16 %v230
      %v319 = vunpack.c.h.b16 %v230
      %v320 = vunpack.c.l.b16 %v231
      %v321 = vunpack.c.h.b16 %v231
      %v322 = vunpack.c.l.b16 %v232
      %v323 = vunpack.c.h.b16 %v232
      %v324 = vunpack.c.l.b16 %v233
      %v325 = vunpack.c.h.b16 %v233
      %v326 = vunpack.c.l.b16 %v234
      %v327 = vunpack.c.h.b16 %v234
      %v328 = vunpack.c.l.b16 %v235
      %v329 = vunpack.c.h.b16 %v235
      %v330 = vunpack.c.l.b16 %v236
      %v331 = vunpack.c.h.b16 %v236
      %v332 = vunpack.c.l.b16 %v237
      %v333 = vunpack.c.h.b16 %v237
      %v334 = vunpack.c.l.b16 %v238
      %v335 = vunpack.c.h.b16 %v238
      %v336 = vunpack.c.l.b16 %v239
      %v337 = vunpack.c.h.b16 %v239
      %v338 = vunpack.c.l.b16 %v240
      %v339 = vunpack.c.h.b16 %v240
      %v340 = vunpack.c.l.b16 %v241
      %v341 = vunpack.c.h.b16 %v241
      %v342 = vunpack.c.l.b16 %v242
      %v343 = vunpack.c.h.b16 %v242
      %v344 = vunpack.c.l.b16 %v243
      %v345 = vunpack.c.h.b16 %v243
      %v346 = vunpack.c.l.b16 %v244
      %v347 = vunpack.c.h.b16 %v244
      %v348 = vunpack.c.l.b16 %v245
      %v349 = vunpack.c.h.b16 %v245
      %v350 = vunpack.c.l.b16 %v246
      %v351 = vunpack.c.h.b16 %v246
      %v352 = vunpack.c.l.b16 %v247
      %v353 = vunpack.c.h.b16 %v247
      %v354 = vunpack.c.l.b16 %v248
      %v355 = vunpack.c.h.b16 %v248
      %v356 = vunpack.c.l.b16 %v249
      %v357 = vunpack.c.h.b16 %v249
      %v358 = vunpack.c.l.b16 %v250
      %v359 = vunpack.c.h.b16 %v250
      %v360 = vunpack.c.l.b16 %v251
      %v361 = vunpack.c.h.b16 %v251
      %v362 = vunpack.c.l.b16 %v252
      %v363 = vunpack.c.h.b16 %v252
      %v364 = vunpack.c.l.b16 %v253
      %v365 = vunpack.c.h.b16 %v253
      %v366 = vunpack.c.l.b16 %v254
      %v367 = vunpack.c.h.b16 %v254
      %v368 = vunpack.c.l.b16 %v255
      %v369 = vunpack.c.h.b16 %v255
      %v370 = vunpack.c.l.b16 %v256
      %v371 = vunpack.c.h.b16 %v256
      %v372 = vunpack.c.l.b16 %v257
      %v373 = vunpack.c.h.b16 %v257
      %v374 = vunpack.c.l.b16 %v258
      %v375 = vunpack.c.h.b16 %v258
      %v376 = vunpack.c.l.b16 %v259
      %v377 = vunpack.c.h.b16 %v259
      %v378 = vunpack.c.l.b16 %v260
      %v379 = vunpack.c.h.b16 %v260
      %v380 = vpack.c.b16 %v318, %v316
      %v381 = vpack.c.b16 %v319, %v317
      %v382 = vpack.c.b16 %v322, %v320
      %v383 = vpack.c.b16 %v323, %v321
      %v384 = vpack.c.b16 %v326, %v324
      %v385 = vpack.c.b16 %v327, %v325
      %v386 = vpack.c.b16 %v330, %v328
      %v387 = vpack.c.b16 %v331, %v329
      %v388 = vpack.c.b16 %v334, %v332
      %v389 = vpack.c.b16 %v335, %v333
      %v390 = vpack.c.b16 %v338, %v336
      %v391 = vpack.c.b16 %v339, %v337
      %v392 = vpack.c.b16 %v342, %v340
      %v393 = vpack.c.b16 %v343, %v341
      %v394 = vpack.c.b16 %v346, %v344
      %v395 = vpack.c.b16 %v347, %v345
      %v396 = vpack.c.b16 %v350, %v348
      %v397 = vpack.c.b16 %v351, %v349
      %v398 = vpack.c.b16 %v354, %v352
      %v399 = vpack.c.b16 %v355, %v353
      %v400 = vpack.c.b16 %v358, %v356
      %v401 = vpack.c.b16 %v359, %v357
      %v402 = vpack.c.b16 %v362, %v360
      %v403 = vpack.c.b16 %v363, %v361
      %v404 = vpack.c.b16 %v366, %v364
      %v405 = vpack.c.b16 %v367, %v365
      %v406 = vpack.c.b16 %v370, %v368
      %v407 = vpack.c.b16 %v371, %v369
      %v408 = vpack.c.b16 %v374, %v372
      %v409 = vpack.c.b16 %v375, %v373
      %v410 = vpack.c.b16 %v378, %v376
      %v411 = vpack.c.b16 %v379, %v377
      %v447 = vunpack.c.l.b16 %v261
      %v448 = vunpack.c.l.b16 %v262
      %v449 = vunpack.c.l.b16 %v263
      %v450 = vunpack.c.l.b16 %v264
      %v451 = vunpack.c.l.b16 %v265
      %v452 = vunpack.c.l.b16 %v266
      %v453 = vunpack.c.l.b16 %v267
      %v454 = vunpack.c.l.b16 %v268
      %v455 = vunpack.c.l.b16 %v269
      %v456 = vunpack.c.l.b16 %v270
      %v457 = vunpack.c.l.b16 %v271
      %v458 = vunpack.c.l.b16 %v272
      %v459 = vunpack.c.l.b16 %v273
      %v460 = vunpack.c.l.b16 %v274
      %v461 = vunpack.c.l.b16 %v275
      %v462 = vunpack.c.l.b16 %v276
      %v463 = vunpack.c.l.b16 %v277
      %v464 = vunpack.c.l.b16 %v278
      %v465 = vunpack.c.l.b16 %v279
      %v466 = vpack.c.b16 %v448, %v447
      %v467 = vpack.c.b16 %v450, %v449
      %v468 = vpack.c.b16 %v452, %v451
      %v469 = vpack.c.b16 %v454, %v453
      %v470 = vpack.c.b16 %v456, %v455
      %v471 = vpack.c.b16 %v458, %v457
      %v472 = vpack.c.b16 %v460, %v459
      %v473 = vpack.c.b16 %v462, %v461
      %v474 = vpack.c.b16 %v464, %v463
      %v475 = vpack.c.b16 %v465, %v465
      %vm485 = vcmask 154624
      %v487 = vsel %vm485, %v381, 0
      %v490 = vsel %vm485, %v383, 0
      %v493 = vsel %vm485, %v385, 0
      %v496 = vsel %vm485, %v387, 0
      %v499 = vsel %vm485, %v389, 0
      %v502 = vsel %vm485, %v391, 0
      %v505 = vsel %vm485, %v393, 0
      %v508 = vsel %vm485, %v395, 0
      %v511 = vsel %vm485, %v397, 0
      %v514 = vsel %vm485, %v399, 0
      %v517 = vsel %vm485, %v401, 0
      %v520 = vsel %vm485, %v403, 0
      %v523 = vsel %vm485, %v405, 0
      %v526 = vsel %vm485, %v407, 0
      %v529 = vsel %vm485, %v409, 0
      %v532 = vsel %vm485, %v411, 0
      %vm534 = vcmask 1040384
      %vm535 = vcmask 1041408
      %v536 = vsel %vm534, 4294967295, 65535
      %v537 = vsel %vm535, %v536, 0
      %v539 = vand.u32 %v475, %v537
      %541 = vmatpush.bf16.msra.mxu0 %v473
      %542 = vmatpush.bf16.msra.mxu0 %v472
      %543 = vmatpush.bf16.msra.mxu0 %v471
      %544 = vmatpush.bf16.msra.mxu0 %v470
      %545 = vmatpush.bf16.msra.mxu0 %v469
      %546 = vmatpush.bf16.msra.mxu0 %v468
      %547 = vmatpush.bf16.msra.mxu0 %v467
      %548 = vmatpush.bf16.msra.mxu0 %v466
      %549 = vmatmul.bf16.gmra.mxu0 %v380
      %v550 = vpop.f32.mrf.mxu0
      %v551 = vadd.f32 %v282, %v550
      %v552 = vpop.f32.mrf.mxu0
      %v553 = vadd.f32 %v282, %v552
      %554 = vmatmul.bf16.gmra.mxu0 %v382
      %v555 = vpop.f32.mrf.mxu0
      %v556 = vadd.f32 %v282, %v555
      %v557 = vpop.f32.mrf.mxu0
      %v558 = vadd.f32 %v282, %v557
      %559 = vmatmul.bf16.gmra.mxu0 %v384
      %v560 = vpop.f32.mrf.mxu0
      %v561 = vadd.f32 %v282, %v560
      %v562 = vpop.f32.mrf.mxu0
      %v563 = vadd.f32 %v282, %v562
      %564 = vmatmul.bf16.gmra.mxu0 %v386
      %v565 = vpop.f32.mrf.mxu0
      %v566 = vadd.f32 %v282, %v565
      %v567 = vpop.f32.mrf.mxu0
      %v568 = vadd.f32 %v282, %v567
      %569 = vmatmul.bf16.gmra.mxu0 %v388
      %v570 = vpop.f32.mrf.mxu0
      %v571 = vadd.f32 %v282, %v570
      %v572 = vpop.f32.mrf.mxu0
      %v573 = vadd.f32 %v282, %v572
      %574 = vmatmul.bf16.gmra.mxu0 %v390
      %v575 = vpop.f32.mrf.mxu0
      %v576 = vadd.f32 %v282, %v575
      %v577 = vpop.f32.mrf.mxu0
      %v578 = vadd.f32 %v282, %v577
      %579 = vmatmul.bf16.gmra.mxu0 %v392
      %v580 = vpop.f32.mrf.mxu0
      %v581 = vadd.f32 %v282, %v580
      %v582 = vpop.f32.mrf.mxu0
      %v583 = vadd.f32 %v282, %v582
      %584 = vmatmul.bf16.gmra.mxu0 %v394
      %v585 = vpop.f32.mrf.mxu0
      %v586 = vadd.f32 %v282, %v585
      %v587 = vpop.f32.mrf.mxu0
      %v588 = vadd.f32 %v282, %v587
      %589 = vmatmul.bf16.gmra.mxu0 %v396
      %v590 = vpop.f32.mrf.mxu0
      %v591 = vadd.f32 %v282, %v590
      %v592 = vpop.f32.mrf.mxu0
      %v593 = vadd.f32 %v282, %v592
      %594 = vmatmul.bf16.gmra.mxu0 %v398
      %v595 = vpop.f32.mrf.mxu0
      %v596 = vadd.f32 %v282, %v595
      %v597 = vpop.f32.mrf.mxu0
      %v598 = vadd.f32 %v282, %v597
      %599 = vmatmul.bf16.gmra.mxu0 %v400
      %v600 = vpop.f32.mrf.mxu0
      %v601 = vadd.f32 %v282, %v600
      %v602 = vpop.f32.mrf.mxu0
      %v603 = vadd.f32 %v282, %v602
      %604 = vmatmul.bf16.gmra.mxu0 %v402
      %v605 = vpop.f32.mrf.mxu0
      %v606 = vadd.f32 %v282, %v605
      %v607 = vpop.f32.mrf.mxu0
      %v608 = vadd.f32 %v282, %v607
      %609 = vmatmul.bf16.gmra.mxu0 %v404
      %v610 = vpop.f32.mrf.mxu0
      %v611 = vadd.f32 %v282, %v610
      %v612 = vpop.f32.mrf.mxu0
      %v613 = vadd.f32 %v282, %v612
      %614 = vmatmul.bf16.gmra.mxu0 %v406
      %v615 = vpop.f32.mrf.mxu0
      %v616 = vadd.f32 %v282, %v615
      %v617 = vpop.f32.mrf.mxu0
      %v618 = vadd.f32 %v282, %v617
      %619 = vmatmul.bf16.gmra.mxu0 %v408
      %v620 = vpop.f32.mrf.mxu0
      %v621 = vadd.f32 %v282, %v620
      %v622 = vpop.f32.mrf.mxu0
      %v623 = vadd.f32 %v282, %v622
      %624 = vmatmul.bf16.gmra.mxu0 %v410
      %v625 = vpop.f32.mrf.mxu0
      %v626 = vadd.f32 %v282, %v625
      %v627 = vpop.f32.mrf.mxu0
      %v628 = vadd.f32 %v282, %v627
      %629 = vdwg.mxu0
      %630 = vmatpush.bf16.msra.mxu0 0
      %631 = vmatpush.bf16.msra.mxu0 0
      %632 = vmatpush.bf16.msra.mxu0 0
      %633 = vmatpush.bf16.msra.mxu0 0
      %634 = vmatpush.bf16.msra.mxu0 0
      %635 = vmatpush.bf16.msra.mxu0 0
      %636 = vmatpush.bf16.msra.mxu0 %v539
      %637 = vmatpush.bf16.msra.mxu0 %v474
      %638 = vmatmul.bf16.gmra.mxu0 %v487
      %v639 = vpop.f32.mrf.mxu0
      %v640 = vadd.f32 %v551, %v639
      %v641 = vpop.f32.mrf.mxu0
      %v642 = vadd.f32 %v553, %v641
      %643 = vmatmul.bf16.gmra.mxu0 %v490
      %v644 = vpop.f32.mrf.mxu0
      %v645 = vadd.f32 %v556, %v644
      %v646 = vpop.f32.mrf.mxu0
      %v647 = vadd.f32 %v558, %v646
      %648 = vmatmul.bf16.gmra.mxu0 %v493
      %v649 = vpop.f32.mrf.mxu0
      %v650 = vadd.f32 %v561, %v649
      %v651 = vpop.f32.mrf.mxu0
      %v652 = vadd.f32 %v563, %v651
      %653 = vmatmul.bf16.gmra.mxu0 %v496
      %v654 = vpop.f32.mrf.mxu0
      %v655 = vadd.f32 %v566, %v654
      %v656 = vpop.f32.mrf.mxu0
      %v657 = vadd.f32 %v568, %v656
      %658 = vmatmul.bf16.gmra.mxu0 %v499
      %v659 = vpop.f32.mrf.mxu0
      %v660 = vadd.f32 %v571, %v659
      %v661 = vpop.f32.mrf.mxu0
      %v662 = vadd.f32 %v573, %v661
      %663 = vmatmul.bf16.gmra.mxu0 %v502
      %v664 = vpop.f32.mrf.mxu0
      %v665 = vadd.f32 %v576, %v664
      %v666 = vpop.f32.mrf.mxu0
      %v667 = vadd.f32 %v578, %v666
      %668 = vmatmul.bf16.gmra.mxu0 %v505
      %v669 = vpop.f32.mrf.mxu0
      %v670 = vadd.f32 %v581, %v669
      %v671 = vpop.f32.mrf.mxu0
      %v672 = vadd.f32 %v583, %v671
      %673 = vmatmul.bf16.gmra.mxu0 %v508
      %v674 = vpop.f32.mrf.mxu0
      %v675 = vadd.f32 %v586, %v674
      %v676 = vpop.f32.mrf.mxu0
      %v677 = vadd.f32 %v588, %v676
      %678 = vmatmul.bf16.gmra.mxu0 %v511
      %v679 = vpop.f32.mrf.mxu0
      %v680 = vadd.f32 %v591, %v679
      %v681 = vpop.f32.mrf.mxu0
      %v682 = vadd.f32 %v593, %v681
      %683 = vmatmul.bf16.gmra.mxu0 %v514
      %v684 = vpop.f32.mrf.mxu0
      %v685 = vadd.f32 %v596, %v684
      %v686 = vpop.f32.mrf.mxu0
      %v687 = vadd.f32 %v598, %v686
      %688 = vmatmul.bf16.gmra.mxu0 %v517
      %v689 = vpop.f32.mrf.mxu0
      %v690 = vadd.f32 %v601, %v689
      %v691 = vpop.f32.mrf.mxu0
      %v692 = vadd.f32 %v603, %v691
      %693 = vmatmul.bf16.gmra.mxu0 %v520
      %v694 = vpop.f32.mrf.mxu0
      %v695 = vadd.f32 %v606, %v694
      %v696 = vpop.f32.mrf.mxu0
      %v697 = vadd.f32 %v608, %v696
      %698 = vmatmul.bf16.gmra.mxu0 %v523
      %v699 = vpop.f32.mrf.mxu0
      %v700 = vadd.f32 %v611, %v699
      %v701 = vpop.f32.mrf.mxu0
      %v702 = vadd.f32 %v613, %v701
      %703 = vmatmul.bf16.gmra.mxu0 %v526
      %v704 = vpop.f32.mrf.mxu0
      %v705 = vadd.f32 %v616, %v704
      %v706 = vpop.f32.mrf.mxu0
      %v707 = vadd.f32 %v618, %v706
      %708 = vmatmul.bf16.gmra.mxu0 %v529
      %v709 = vpop.f32.mrf.mxu0
      %v710 = vadd.f32 %v621, %v709
      %v711 = vpop.f32.mrf.mxu0
      %v712 = vadd.f32 %v623, %v711
      %713 = vmatmul.bf16.gmra.mxu0 %v532
      %v714 = vpop.f32.mrf.mxu0
      %v715 = vadd.f32 %v626, %v714
      %v716 = vpop.f32.mrf.mxu0
      %v717 = vadd.f32 %v628, %v716
      %718 = vdwg.mxu0
      %v719 = vmax.f32 %v640, 0.0
      %v720 = vmax.f32 %v642, 0.0
      %v721 = vmax.f32 %v645, 0.0
      %v722 = vmax.f32 %v647, 0.0
      %v723 = vmax.f32 %v650, 0.0
      %v724 = vmax.f32 %v652, 0.0
      %v725 = vmax.f32 %v655, 0.0
      %v726 = vmax.f32 %v657, 0.0
      %v727 = vmax.f32 %v660, 0.0
      %v728 = vmax.f32 %v662, 0.0
      %v729 = vmax.f32 %v665, 0.0
      %v730 = vmax.f32 %v667, 0.0
      %v731 = vmax.f32 %v670, 0.0
      %v732 = vmax.f32 %v672, 0.0
      %v733 = vmax.f32 %v675, 0.0
      %v734 = vmax.f32 %v677, 0.0
      %v735 = vmax.f32 %v680, 0.0
      %v736 = vmax.f32 %v682, 0.0
      %v737 = vmax.f32 %v685, 0.0
      %v738 = vmax.f32 %v687, 0.0
      %v739 = vmax.f32 %v690, 0.0
      %v740 = vmax.f32 %v692, 0.0
      %v741 = vmax.f32 %v695, 0.0
      %v742 = vmax.f32 %v697, 0.0
      %v743 = vmax.f32 %v700, 0.0
      %v744 = vmax.f32 %v702, 0.0
      %v745 = vmax.f32 %v705, 0.0
      %v746 = vmax.f32 %v707, 0.0
      %v747 = vmax.f32 %v710, 0.0
      %v748 = vmax.f32 %v712, 0.0
      %v749 = vmax.f32 %v715, 0.0
      %v750 = vmax.f32 %v717, 0.0
      %v751 = vpack.c.bf16 %v719, %v719
      %v752 = vpack.c.bf16 %v720, %v720
      %v753 = vpack.c.bf16 %v721, %v721
      %v754 = vpack.c.bf16 %v722, %v722
      %v755 = vpack.c.bf16 %v723, %v723
      %v756 = vpack.c.bf16 %v724, %v724
      %v757 = vpack.c.bf16 %v725, %v725
      %v758 = vpack.c.bf16 %v726, %v726
      %v759 = vpack.c.bf16 %v727, %v727
      %v760 = vpack.c.bf16 %v728, %v728
      %v761 = vpack.c.bf16 %v729, %v729
      %v762 = vpack.c.bf16 %v730, %v730
      %v763 = vpack.c.bf16 %v731, %v731
      %v764 = vpack.c.bf16 %v732, %v732
      %v765 = vpack.c.bf16 %v733, %v733
      %v766 = vpack.c.bf16 %v734, %v734
      %v767 = vpack.c.bf16 %v735, %v735
      %v768 = vpack.c.bf16 %v736, %v736
      %v769 = vpack.c.bf16 %v737, %v737
      %v770 = vpack.c.bf16 %v738, %v738
      %v771 = vpack.c.bf16 %v739, %v739
      %v772 = vpack.c.bf16 %v740, %v740
      %v773 = vpack.c.bf16 %v741, %v741
      %v774 = vpack.c.bf16 %v742, %v742
      %v775 = vpack.c.bf16 %v743, %v743
      %v776 = vpack.c.bf16 %v744, %v744
      %v777 = vpack.c.bf16 %v745, %v745
      %v778 = vpack.c.bf16 %v746, %v746
      %v779 = vpack.c.bf16 %v747, %v747
      %v780 = vpack.c.bf16 %v748, %v748
      %v781 = vpack.c.bf16 %v749, %v749
      %v782 = vpack.c.bf16 %v750, %v750
      %vm783 = vcmask 519168
      %784 = vst.msk [vmem:[%s226] sm:$0xf] %vm783, %v751
      %785 = vst.msk [vmem:[%s226 + $0x4] sm:$0xf] %vm783, %v752
      %786 = vst.msk [vmem:[%s226 + $0x8] sm:$0xf] %vm783, %v753
      %787 = vst.msk [vmem:[%s226 + $0xc] sm:$0xf] %vm783, %v754
      %788 = vst.msk [vmem:[%s226 + $0x10] sm:$0xf] %vm783, %v755
      %789 = vst.msk [vmem:[%s226 + $0x14] sm:$0xf] %vm783, %v756
      %790 = vst.msk [vmem:[%s226 + $0x18] sm:$0xf] %vm783, %v757
      %791 = vst.msk [vmem:[%s226 + $0x1c] sm:$0xf] %vm783, %v758
      %792 = vst.msk [vmem:[%s226 + $0x20] sm:$0xf] %vm783, %v759
      %793 = vst.msk [vmem:[%s226 + $0x24] sm:$0xf] %vm783, %v760
      %794 = vst.msk [vmem:[%s226 + $0x28] sm:$0xf] %vm783, %v761
      %795 = vst.msk [vmem:[%s226 + $0x2c] sm:$0xf] %vm783, %v762
      %796 = vst.msk [vmem:[%s226 + $0x30] sm:$0xf] %vm783, %v763
      %797 = vst.msk [vmem:[%s226 + $0x34] sm:$0xf] %vm783, %v764
      %798 = vst.msk [vmem:[%s226 + $0x38] sm:$0xf] %vm783, %v765
      %799 = vst.msk [vmem:[%s226 + $0x3c] sm:$0xf] %vm783, %v766
      %800 = vst.msk [vmem:[%s226 + $0x40] sm:$0xf] %vm783, %v767
      %801 = vst.msk [vmem:[%s226 + $0x44] sm:$0xf] %vm783, %v768
      %802 = vst.msk [vmem:[%s226 + $0x48] sm:$0xf] %vm783, %v769
      %803 = vst.msk [vmem:[%s226 + $0x4c] sm:$0xf] %vm783, %v770
      %804 = vst.msk [vmem:[%s226 + $0x50] sm:$0xf] %vm783, %v771
      %805 = vst.msk [vmem:[%s226 + $0x54] sm:$0xf] %vm783, %v772
      %806 = vst.msk [vmem:[%s226 + $0x58] sm:$0xf] %vm783, %v773
      %807 = vst.msk [vmem:[%s226 + $0x5c] sm:$0xf] %vm783, %v774
      %808 = vst.msk [vmem:[%s226 + $0x60] sm:$0xf] %vm783, %v775
      %809 = vst.msk [vmem:[%s226 + $0x64] sm:$0xf] %vm783, %v776
      %810 = vst.msk [vmem:[%s226 + $0x68] sm:$0xf] %vm783, %v777
      %811 = vst.msk [vmem:[%s226 + $0x6c] sm:$0xf] %vm783, %v778
      %812 = vst.msk [vmem:[%s226 + $0x70] sm:$0xf] %vm783, %v779
      %813 = vst.msk [vmem:[%s226 + $0x74] sm:$0xf] %vm783, %v780
      %814 = vst.msk [vmem:[%s226 + $0x78] sm:$0xf] %vm783, %v781
      %815 = vst.msk [vmem:[%s226 + $0x7c] sm:$0xf] %vm783, %v782
      %s816 = smul.u32 32, %s18
      %p817 = scmp.lt.s32.totalorder %s816, 63
      %s818 = scalar_select %p817, %s816, 63
      %p819 = scmp.lt.s32.totalorder %s19, 0
      %s820 = scalar_select %p819, %s19, 0
      %s821 = sadd.s32 %s820, %s818
      %s822 = smul.addr %s821, 4
      %s823 = scalar_lea.vmem %s3, %s822
      // Predicated region
      $region33: #{_matmul_plain.1} parent=31 // pred_check
        %p824 = pneg %p124
      $region34: #{_matmul_plain.1} parent=31 // pred_check_branch
        %826 = sbr.rel (%p824) target = $region36
      $region35: #{_matmul_plain.1} parent=31 // pred_region
        %s827 = smul.u32 32, %s18
      $region36: #{_matmul_plain.1} parent=31 // pred_fallthru
        _
    $region32: #{_matmul_plain.1} parent=5 // pred_fallthru
      _
    %p828 = scmp.le.s32.totalorder 2, %s9
    // Predicated region
    $region37: #{_matmul_plain.1} parent=5 // pred_check
      %p829 = pneg %p828
    $region38: #{_matmul_plain.1} parent=5 // pred_check_branch
      %831 = sbr.rel (%p829) target = $region40
    $region39: #{_matmul_plain.1} parent=5 // pred_region
      %s832 = ssub.s32 %s9, 2
      // Predicated region
      $region41: #{_matmul_plain.1} parent=39 // pred_check
        %p833 = pneg %p130
      $region42: #{_matmul_plain.1} parent=39 // pred_check_branch
        %835 = sbr.rel (%p833) target = $region44
      $region43: #{_matmul_plain.1} parent=39 // pred_region
        %s836 = smul.u32 32, %s20
        %p837 = scmp.lt.s32.totalorder %s836, 63
        %s838 = scalar_select %p837, %s836, 63
        %p839 = scmp.lt.s32.totalorder %s21, 0
        %s840 = scalar_select %p839, %s21, 0
        %s841 = sadd.s32 %s840, %s838
        %s842 = smul.addr %s841, 4
        %s843 = scalar_lea.vmem %s3, %s842
      $region44: #{_matmul_plain.1} parent=39 // pred_fallthru
        _
    $region40: #{_matmul_plain.1} parent=5 // pred_fallthru
      _
  $region6: #{_matmul_plain.1} parent=0 // loop_footer
    %s13 = sadd.s32 1, %s9
  $region7: #{_matmul_plain.1} parent=0 // loop_footer_branch
    %8 = sbr.rel target = $region3
  $region8: #{_matmul_plain.1} parent=0 // loop_exit
    _

</llo_original>
